<compile_context>
chip_gen: v6e
topology: v6e:2x2x1
jax: 0.10.0
libtpu: 0.0.40
codegen_flags: <defaults>
</compile_context>

<pallas_src>
import functools

import jax
import jax.numpy as jnp
from jax import lax
from jax.experimental import pallas as pl
from jax.experimental.pallas import tpu as pltpu

LANES = 128


def _device_defaults():
    """Return (default_block_rows, n_core_splits) for the local TPU generation."""
    kind = ""
    try:
        kind = jax.devices()[0].device_kind.lower()
    except Exception:  # pragma: no cover - defensive; fall back to safe defaults
        pass
    if "v7" in kind:
        # v7x: 2 TensorCores/chip, ~3.2 TB/s HBM, 64 MiB VMEM (32 MiB scoped
        # default).  8192 rows = 4 MiB/input/buffer -> 16 MiB double-buffered.
        return 8192, 2
    # v5e / v6e (and unknown): 1 TensorCore.  4096 rows = 2 MiB/input/buffer
    # -> 8 MiB double-buffered, comfortably inside the 16 MiB scoped default.
    return 4096, 1


def _mrae_kernel(pred_ref, gt_ref, out_ref, acc_ref, *,
                 block_rows, blocks_per_split, m_rows, mask_needed, acc_rows):
    i = pl.program_id(1)

    @pl.when(i == 0)
    def _():
        acc_ref[...] = jnp.zeros_like(acc_ref)

    # Stream the native dtype from HBM; widen to f32 on the VPU after load.
    pred = pred_ref[...].astype(jnp.float32)
    gt = gt_ref[...].astype(jnp.float32)

    # True divide: exact PyTorch semantics.  Not a free EUP op, but fully
    # hidden under the HBM DMA in this memory-bound kernel.
    err = jnp.abs(pred - gt) / gt

    if mask_needed:
        # Logical (unclamped) row range of this block.  Rows at/after m_rows
        # (ragged last tile or fully-overhanging clamped blocks) contribute
        # exactly 0 via a single select after the divide; any inf/NaN produced
        # from garbage padding rows is discarded by the select.
        row_start = (pl.program_id(0) * blocks_per_split + i) * block_rows
        rows_left = m_rows - row_start
        row_iota = lax.broadcasted_iota(jnp.int32, (block_rows, LANES), 0)
        err = jnp.where(row_iota < rows_left, err, jnp.float32(0.0))

    if acc_rows == 8:
        # vreg-wise fold: elementwise adds only (no cross-sublane XLU reduce),
        # 8 * 128 independent f32 partial sums for better accumulation accuracy.
        acc_ref[...] += jnp.sum(err.reshape(block_rows // 8, 8, LANES), axis=0)
    else:
        # Fallback for a single full-extent block whose row count is not a
        # multiple of 8 (small inputs only).
        acc_ref[...] += jnp.sum(err, axis=0, keepdims=True)

    @pl.when(i == pl.num_programs(1) - 1)
    def _():
        out_ref[0] = acc_ref[...]


def mrae_loss(tensor_pred: jax.Array, tensor_gt: jax.Array,
              *, block_rows: int | None = None) -> jax.Array:
    """Mean Relative Absolute Error, computed in a Pallas TPU kernel."""
    assert tensor_pred.shape == tensor_gt.shape
    n_elems = tensor_pred.size

    default_block_rows, n_splits = _device_defaults()
    if block_rows is None:
        block_rows = default_block_rows

    # Keep sub-32-bit floats in their native dtype (halves HBM traffic for
    # bf16/f16); widen anything else (ints, f64) once in the wrapper.
    if tensor_pred.dtype in (jnp.dtype(jnp.float32), jnp.dtype(jnp.bfloat16),
                             jnp.dtype(jnp.float16)):
        kdtype = tensor_pred.dtype
    else:
        kdtype = jnp.dtype(jnp.float32)
    itemsize = jnp.dtype(kdtype).itemsize
    row_mult = 8 * (4 // itemsize)  # f32 -> 8, bf16/f16 -> 16 (sublane packing)

    pred_flat = tensor_pred.reshape(-1).astype(kdtype)
    gt_flat = tensor_gt.reshape(-1).astype(kdtype)

    # Ragged (<128-element) tail: tiny plain-jnp expression in the wrapper.
    # The kernel streams the lane-aligned prefix only (no whole-array pad).
    aligned = (n_elems // LANES) * LANES
    tail_sum = jnp.float32(0.0)
    if aligned != n_elems:
        tail_p = pred_flat[aligned:].astype(jnp.float32)
        tail_g = gt_flat[aligned:].astype(jnp.float32)
        tail_sum = jnp.sum(jnp.abs((tail_p - tail_g) / tail_g))
    if aligned == 0:
        return tail_sum / jnp.float32(n_elems)

    m_rows = aligned // LANES
    pred2d = pred_flat[:aligned].reshape(m_rows, LANES)
    gt2d = gt_flat[:aligned].reshape(m_rows, LANES)

    # --- Tiling -------------------------------------------------------------
    if m_rows <= block_rows:
        block_rows = m_rows            # single full-extent block (always legal)
        n_splits = 1                   # nothing to split / pipeline
    else:
        block_rows = max(row_mult, (block_rows // row_mult) * row_mult)
        if n_splits > 1:
            # Keep >= 2 blocks per core so the BlockSpec pipeline can prefetch.
            cap = (m_rows // (2 * n_splits)) // row_mult * row_mult
            if cap >= row_mult:
                block_rows = min(block_rows, cap)
            else:
                n_splits = 1

    total_blocks = pl.cdiv(m_rows, block_rows)
    blocks_per_split = pl.cdiv(total_blocks, n_splits)
    grid = (n_splits, blocks_per_split)
    mask_needed = (n_splits * blocks_per_split * block_rows) != m_rows
    acc_rows = 8 if (block_rows % 8 == 0) else 1

    def in_map(c, i):
        # Clamp so fully-overhanging blocks (odd split counts) re-read valid
        # data; their contribution is masked to exactly zero inside the kernel.
        return (jnp.minimum(c * blocks_per_split + i, total_blocks - 1), 0)

    kernel = functools.partial(
        _mrae_kernel,
        block_rows=block_rows,
        blocks_per_split=blocks_per_split,
        m_rows=m_rows,
        mask_needed=mask_needed,
        acc_rows=acc_rows,
    )

    if n_splits > 1:
        # Real 2-way TensorCore shard on v7x.
        dim_sem = (getattr(pltpu, "CORE_PARALLEL", "parallel"), pltpu.ARBITRARY)
    else:
        dim_sem = ("arbitrary", "arbitrary")

    partials = pl.pallas_call(
        kernel,
        out_shape=jax.ShapeDtypeStruct((n_splits, acc_rows, LANES), jnp.float32),
        grid_spec=pltpu.PrefetchScalarGridSpec(
            num_scalar_prefetch=0,
            grid=grid,
            in_specs=[
                pl.BlockSpec((block_rows, LANES), in_map),
                pl.BlockSpec((block_rows, LANES), in_map),
            ],
            out_specs=pl.BlockSpec((1, acc_rows, LANES), lambda c, i: (c, 0, 0)),
            scratch_shapes=[pltpu.VMEM((acc_rows, LANES), jnp.float32)],
        ),
        compiler_params=pltpu.CompilerParams(dimension_semantics=dim_sem),
    )(pred2d, gt2d)

    # Single cross-lane / cross-core reduce + mean, outside the hot loop.
    return (jnp.sum(partials) + tail_sum) / jnp.float32(n_elems)


if __name__ == "__main__":
    root = jax.random.PRNGKey(0)

    def check(key, shape, dtype=jnp.float32, block_rows=None,
              rtol=1e-5, atol=1e-6):
        k1, k2 = jax.random.split(key)
        pred = jax.random.uniform(k1, shape, jnp.float32, 0.1, 1.0).astype(dtype)
        gt = jax.random.uniform(k2, shape, jnp.float32, 0.1, 1.0).astype(dtype)
        got = mrae_loss(pred, gt, block_rows=block_rows)
        jax.block_until_ready(got)
        p32, g32 = pred.astype(jnp.float32), gt.astype(jnp.float32)
        ref = jnp.mean(jnp.abs((p32 - g32) / g32))
        assert jnp.allclose(got, ref, rtol=rtol, atol=atol), (shape, dtype, got, ref)

    keys = jax.random.split(root, 5)
    # Primary case from the module spec (NCHW training-loss use), single block.
    check(keys[0], (2, 4, 16, 16))
    # Multi-block accumulation (small block override), no masking path.
    check(keys[1], (2, 4, 32, 32), block_rows=8)
    # Ragged last row-tile -> in-kernel masking path.
    check(keys[2], (2, 4, 16, 18), block_rows=8)
    # Element count not a multiple of 128 -> plain-jnp tail path.
    check(keys[3], (2, 3, 15, 17))
    # Native bf16 streaming (cast to f32 inside the kernel).
    check(keys[4], (2, 4, 16, 16), dtype=jnp.bfloat16)

    print("KERNEL_OK")
</pallas_src>

<mosaic_0001>
module attributes {stable_mosaic.version = 11 : i64} {
  func.func @_mrae_kernel(%arg0: i32, %arg1: i32, %arg2: memref<16x128xf32, #tpu.memory_space<vmem>>, %arg3: memref<16x128xf32, #tpu.memory_space<vmem>>, %arg4: memref<1x8x128xf32, #tpu.memory_space<vmem>>, %arg5: memref<8x128xf32, #tpu.memory_space<vmem>>) attributes {dimension_semantics = [#tpu.dimension_semantics<arbitrary>, #tpu.dimension_semantics<arbitrary>], iteration_bounds = array<i64: 1, 1>, scalar_prefetch = 0 : i64, scratch_operands = 1 : i64, tpu.core_type = #tpu.core_type<tc>, window_params = [{transform_indices = @transform_0, window_bounds = array<i64: 16, 128>}, {transform_indices = @transform_1, window_bounds = array<i64: 16, 128>}, {transform_indices = @transform_2, window_bounds = array<i64: 1, 8, 128>}]} {
    %c0_i32 = arith.constant 0 : i32
    %0 = arith.cmpi eq, %arg1, %c0_i32 : i32
    %1 = arith.extui %0 : i1 to i32
    %c0_i32_0 = arith.constant 0 : i32
    %2 = arith.cmpi ne, %1, %c0_i32_0 : i32
    scf.if %2 {
      %cst_10 = arith.constant 0.000000e+00 : f32
      %16 = vector.broadcast %cst_10 : f32 to vector<8x128xf32>
      %c0_11 = arith.constant 0 : index
      %c0_12 = arith.constant 0 : index
      %17 = vector.load %arg5[%c0_11, %c0_12] : memref<8x128xf32, #tpu.memory_space<vmem>>, vector<8x128xf32>
      tpu.vector_store %arg5[%c0_11, %c0_12], %16 {strides = array<i32>} : memref<8x128xf32, #tpu.memory_space<vmem>>, vector<8x128xf32>,
    } else {
    }
    %c0 = arith.constant 0 : index
    %c0_1 = arith.constant 0 : index
    %3 = vector.load %arg2[%c0, %c0_1] : memref<16x128xf32, #tpu.memory_space<vmem>>, vector<16x128xf32>
    %c0_2 = arith.constant 0 : index
    %c0_3 = arith.constant 0 : index
    %4 = vector.load %arg3[%c0_2, %c0_3] : memref<16x128xf32, #tpu.memory_space<vmem>>, vector<16x128xf32>
    %5 = arith.subf %3, %4 : vector<16x128xf32>
    %6 = math.absf %5 : vector<16x128xf32>
    %7 = arith.divf %6, %4 : vector<16x128xf32>
    %c0_4 = arith.constant 0 : index
    %c0_5 = arith.constant 0 : index
    %8 = vector.load %arg5[%c0_4, %c0_5] : memref<8x128xf32, #tpu.memory_space<vmem>>, vector<8x128xf32>
    %9 = vector.shape_cast %7 : vector<16x128xf32> to vector<2x8x128xf32>
    %cst = arith.constant dense<0.000000e+00> : vector<8x128xf32>
    %10 = vector.multi_reduction <add>, %9, %cst [0] : vector<2x8x128xf32> to vector<8x128xf32>
    %11 = arith.addf %8, %10 : vector<8x128xf32>
    %c0_6 = arith.constant 0 : index
    %c0_7 = arith.constant 0 : index
    %12 = vector.load %arg5[%c0_6, %c0_7] : memref<8x128xf32, #tpu.memory_space<vmem>>, vector<8x128xf32>
    tpu.vector_store %arg5[%c0_6, %c0_7], %11 {strides = array<i32>} : memref<8x128xf32, #tpu.memory_space<vmem>>, vector<8x128xf32>,
    %c0_i32_8 = arith.constant 0 : i32
    %13 = arith.cmpi eq, %arg1, %c0_i32_8 : i32
    %14 = arith.extui %13 : i1 to i32
    %c0_i32_9 = arith.constant 0 : i32
    %15 = arith.cmpi ne, %14, %c0_i32_9 : i32
    scf.if %15 {
      %c0_10 = arith.constant 0 : index
      %c0_11 = arith.constant 0 : index
      %16 = vector.load %arg5[%c0_10, %c0_11] : memref<8x128xf32, #tpu.memory_space<vmem>>, vector<8x128xf32>
      %c0_12 = arith.constant 0 : index
      %c0_13 = arith.constant 0 : index
      %c0_14 = arith.constant 0 : index
      %17 = vector.load %arg4[%c0_12, %c0_13, %c0_14] : memref<1x8x128xf32, #tpu.memory_space<vmem>>, vector<1x8x128xf32>
      %18 = vector.shape_cast %17 : vector<1x8x128xf32> to vector<8x128xf32>
      %19 = vector.shape_cast %16 : vector<8x128xf32> to vector<1x8x128xf32>
      tpu.vector_store %arg4[%c0_12, %c0_13, %c0_14], %19 {strides = array<i32>} : memref<1x8x128xf32, #tpu.memory_space<vmem>>, vector<1x8x128xf32>,
    } else {
    }
    return
  }
  func.func @transform_0(%arg0: i32, %arg1: i32) -> (i32, i32) {
    %c1_i32 = arith.constant 1 : i32
    %0 = arith.muli %arg0, %c1_i32 : i32
    %1 = arith.addi %0, %arg1 : i32
    %c0_i32 = arith.constant 0 : i32
    %2 = arith.minsi %1, %c0_i32 : i32
    %c0_i32_0 = arith.constant 0 : i32
    %c0_i32_1 = arith.constant 0 : i32
    return %2, %c0_i32_0 : i32, i32
  }
  func.func @transform_1(%arg0: i32, %arg1: i32) -> (i32, i32) {
    %c1_i32 = arith.constant 1 : i32
    %0 = arith.muli %arg0, %c1_i32 : i32
    %1 = arith.addi %0, %arg1 : i32
    %c0_i32 = arith.constant 0 : i32
    %2 = arith.minsi %1, %c0_i32 : i32
    %c0_i32_0 = arith.constant 0 : i32
    %c0_i32_1 = arith.constant 0 : i32
    return %2, %c0_i32_0 : i32, i32
  }
  func.func @transform_2(%arg0: i32, %arg1: i32) -> (i32, i32, i32) {
    %c0_i32 = arith.constant 0 : i32
    %c0_i32_0 = arith.constant 0 : i32
    %c0_i32_1 = arith.constant 0 : i32
    return %arg0, %c0_i32, %c0_i32_0 : i32, i32, i32
  }
}

</mosaic_0001>

<llo_original>
// kernel: tpu_custom_call.1
$region0: #{tpu_custom_call.1}
  #allocation0 [shape = 'u32[]', space=smem, size = 0x4, offset = 0x4, fixed_abs, tag = 'smem constant byte address 0x4 - core index']
  #allocation1 [shape = 'u32[144,128]{1,0:T(1,128)}', space=vmem, size = 0x12000, scoped, tag = 'internal scratch']
  #allocation2 [shape = 'f32[8,128]{1,0:T(8,128)}', space=vmem, size = 0x1000, scoped, tag = 'scratch operand']
  %s0 = inlined_call_operand.hbm [shape: f32[16,128], index: 0, kind: input, shape index: {}]
  %s1 = inlined_call_operand.hbm [shape: f32[16,128], index: 1, kind: input, shape index: {}]
  %s2 = inlined_call_operand.hbm [shape: f32[1,8,128], index: 2, kind: output, shape index: {}]
  %s3 = sld [smem:[#allocation0]]
  $region34: #{tpu_custom_call.1} parent=0
    _
  %s5 = ssub.s32 1, %s3
  %s6 = scalar_select 0, %s5, %s3
  $region1: #{tpu_custom_call.1} parent=0
    #allocation3 [shape = 'u8[8192]{0}', space=vmem, size = 0x2000, scoped, tag = 'input window, operand 0, single buffered']
    #allocation4 [shape = 's32[1]{0}', space=sflag, size = 0x4, scoped, tag = 'scoped memory for tpu_custom_call.1']
    #allocation5 [shape = 's32[1]{0}', space=sflag, size = 0x4, scoped, tag = 'scoped memory for tpu_custom_call.1']
    #allocation6 [shape = 'u8[8192]{0}', space=vmem, size = 0x2000, scoped, tag = 'input window, operand 1, single buffered']
    #allocation7 [shape = 's32[1]{0}', space=sflag, size = 0x4, scoped, tag = 'scoped memory for tpu_custom_call.1']
    #allocation8 [shape = 'u8[4096]{0}', space=vmem, size = 0x1000, scoped, tag = 'output window, operand 0, single buffered']
    %7 = vsyncpa [#allocation4], 0
    %8 = vsyncpa [#allocation7], 0
    %9 = vsyncpa [#allocation5], 0
    // Predicated region
    $region2: #{tpu_custom_call.1} parent=1 // pred_check
      _
    $region3: #{tpu_custom_call.1} parent=1 // pred_check_branch
      %11 = sbr.rel (0) target = $region5
    $region4: #{tpu_custom_call.1} parent=1 // pred_region
      %s12 = sadd.s32 0, 0
      %p13 = scmp.lt.s32.totalorder %s12, 0
      %s14 = scalar_select %p13, %s12, 0
      %s15 = smul.u32 2, %s14
      %s17 = ssub.s32 256, 256
      %18 = vsyncadd [#allocation4], %s17
      %s19 = smul.addr %s15, 128
      %s20 = scalar_lea.hbm %s0, %s19
      %s21 = sshll.u32 [#allocation3], 4
      %s22 = int_to_ptr.vmem [resolvable:$true] %s21
      %27 = dma.hbm_to_vmem [thread:$0]  %s20, 256, %s22, [#allocation4], 128, 128, 8
    $region5: #{tpu_custom_call.1} parent=1 // pred_fallthru
      _
    // Predicated region
    $region6: #{tpu_custom_call.1} parent=1 // pred_check
      _
    $region7: #{tpu_custom_call.1} parent=1 // pred_check_branch
      %29 = sbr.rel (0) target = $region9
    $region8: #{tpu_custom_call.1} parent=1 // pred_region
      %s30 = sadd.s32 0, 0
      %p31 = scmp.lt.s32.totalorder %s30, 0
      %s32 = scalar_select %p31, %s30, 0
      %s33 = smul.u32 2, %s32
      %s35 = ssub.s32 256, 256
      %36 = vsyncadd [#allocation7], %s35
      %s37 = smul.addr %s33, 128
      %s38 = scalar_lea.hbm %s1, %s37
      %s39 = sshll.u32 [#allocation6], 4
      %s40 = int_to_ptr.vmem [resolvable:$true] %s39
      %45 = dma.hbm_to_vmem [thread:$0]  %s38, 256, %s40, [#allocation7], 128, 128, 8
    $region9: #{tpu_custom_call.1} parent=1 // pred_fallthru
      _
    // Predicated region
    $region10: #{tpu_custom_call.1} parent=1 // pred_check
      _
    $region11: #{tpu_custom_call.1} parent=1 // pred_check_branch
      %47 = sbr.rel (0) target = $region13
    $region12: #{tpu_custom_call.1} parent=1 // pred_region
      %48 = dma.done [#allocation4], 256
    $region13: #{tpu_custom_call.1} parent=1 // pred_fallthru
      _
    // Predicated region
    $region14: #{tpu_custom_call.1} parent=1 // pred_check
      _
    $region15: #{tpu_custom_call.1} parent=1 // pred_check_branch
      %50 = sbr.rel (0) target = $region17
    $region16: #{tpu_custom_call.1} parent=1 // pred_region
      %51 = dma.done [#allocation7], 256
    $region17: #{tpu_custom_call.1} parent=1 // pred_fallthru
      _
    %s52 = sadd.s32 0, 0
    %p53 = scmp.lt.s32.totalorder %s52, 0
    %s54 = scalar_select %p53, %s52, 0
    %s55 = smul.u32 2, %s54
    %s56 = sadd.s32 0, 0
    %p57 = scmp.lt.s32.totalorder %s56, 0
    %s58 = scalar_select %p57, %s56, 0
    %s59 = smul.u32 2, %s58
    %p60 = scmp.eq.s32.totalorder 0, 0
    // Predicated region
    $region18: #{tpu_custom_call.1} parent=1 // pred_check
      %p61 = pneg %p60
    $region19: #{tpu_custom_call.1} parent=1 // pred_check_branch
      %63 = sbr.rel (%p61) target = $region21
    $region20: #{tpu_custom_call.1} parent=1 // pred_region
      %64 = vst [vmem:[#allocation2] sm:$0xff] 0.0
    $region21: #{tpu_custom_call.1} parent=1 // pred_fallthru
      _
    %v65 = vld [vmem:[#allocation3] sm:$0xff]
    %v66 = vld [vmem:[#allocation3 + $0x8] sm:$0xff]
    %v67 = vld [vmem:[#allocation6] sm:$0xff]
    %v68 = vld [vmem:[#allocation6 + $0x8] sm:$0xff]
    %v69 = vsub.f32 %v65, %v67
    %v70 = vsub.f32 %v66, %v68
    %v71 = vand.u32 2147483647, %v69
    %v72 = vand.u32 2147483647, %v70
    %v73 = vrcp.pop %v67
    %v74 = vmul.f32 %v71, %v73
    %v75 = vrcp.pop %v68
    %v76 = vmul.f32 %v72, %v75
    %v77 = vld [vmem:[#allocation2] sm:$0xff]
    %v78 = vadd.f32 %v74, %v76
    %v79 = vadd.f32 %v77, %v78
    %80 = vst [vmem:[#allocation2] sm:$0xff] %v79
    // Predicated region
    $region22: #{tpu_custom_call.1} parent=1 // pred_check
      %p81 = pneg %p60
    $region23: #{tpu_custom_call.1} parent=1 // pred_check_branch
      %83 = sbr.rel (%p81) target = $region25
    $region24: #{tpu_custom_call.1} parent=1 // pred_region
      %v84 = vld [vmem:[#allocation2] sm:$0xff]
      %85 = vst [vmem:[#allocation8] sm:$0xff] %v84
    $region25: #{tpu_custom_call.1} parent=1 // pred_fallthru
      _
    // Predicated region
    $region26: #{tpu_custom_call.1} parent=1 // pred_check
      _
    $region27: #{tpu_custom_call.1} parent=1 // pred_check_branch
      %87 = sbr.rel (0) target = $region29
    $region28: #{tpu_custom_call.1} parent=1 // pred_region
      %s89 = ssub.s32 128, 128
      %90 = vsyncadd [#allocation5], %s89
      %s92 = sshll.u32 [#allocation8], 4
      %s93 = int_to_ptr.vmem [resolvable:$true] %s92
      %95 = dma.vmem_to_hbm [thread:$0]  %s93, 128, %s2, [#allocation5]
    $region29: #{tpu_custom_call.1} parent=1 // pred_fallthru
      _
    // Predicated region
    $region30: #{tpu_custom_call.1} parent=1 // pred_check
      _
    $region31: #{tpu_custom_call.1} parent=1 // pred_check_branch
      %97 = sbr.rel (0) target = $region33
    $region32: #{tpu_custom_call.1} parent=1 // pred_region
      %98 = dma.done [#allocation5], 128
    $region33: #{tpu_custom_call.1} parent=1 // pred_fallthru
      _
    %99 = vsyncpa [#allocation4], 1
    %100 = vsyncpa [#allocation7], 1
    %101 = vsyncpa [#allocation5], 1

</llo_original>
